<compile_context>
chip_gen: v5e
topology: v5e:2x2
jax: 0.10.0
libtpu: 0.0.40
codegen_flags: <defaults>
</compile_context>

<pallas_src>
import math

import jax
import jax.numpy as jnp
from jax import lax
from jax.experimental import pallas as pl
from jax.experimental.pallas import tpu as pltpu


# ----------------------------------------------------------------------------
# Fused kernel: embedding lookup + pairwise distances + Gaussian RBF
# ----------------------------------------------------------------------------
def _make_fused_kernel(scale: float):
    """scale = sqrt(-coeff);  ef = exp(-((scale*el) - (scale*center))**2)."""

    def _kernel(z_ref, pos_ref, post_ref, table_ref, centers_ref, expand_ref,
                emb_ref, ef_ref):
        """Fused Mol2Graph forward for one (TB molecules, TN query atoms) tile.

        z_ref:       (TB, TN, 1)   int32  atom types (query rows)
        pos_ref:     (TB, TN, 3)   f32    query positions
        post_ref:    (TB, 3, N)    f32    all positions, coordinate-major (keys)
        table_ref:   (V, H)        f32    embedding table (row 0 zeroed)
        centers_ref: (1, N*K)      f32    sqrt(-coeff)*centers, tiled N times
        expand_ref:  (N, N*K)      f32    block one-hot expand matrix
        emb_ref:     (TB, TN, H)   f32
        ef_ref:      (TB, TN, N*K) out dtype
        """
        tb, tn, _ = pos_ref.shape
        v, h = table_ref.shape
        n = post_ref.shape[-1]
        nk = ef_ref.shape[-1]

        # ---- Embedding as one-hot matmul on the MXU (exact under HIGHEST) ----
        z2d = z_ref[...].reshape(tb * tn, 1)
        col = lax.broadcasted_iota(jnp.int32, (tb * tn, v), 1)
        one_hot = (z2d == col).astype(jnp.float32)                   # (TB*TN, V)
        emb2d = jnp.dot(one_hot, table_ref[...],
                        preferred_element_type=jnp.float32,
                        precision=lax.Precision.HIGHEST)             # (TB*TN, H)
        emb_ref[...] = emb2d.reshape(tb, tn, h).astype(emb_ref.dtype)

        # ---- Pairwise distances at N lane width (NOT N*K) --------------------
        p = pos_ref[...]                                             # (TB, TN, 3)
        pt = post_ref[...]                                           # (TB, 3, N)
        dx = p[:, :, 0:1] - pt[:, 0:1, :]                            # (TB, TN, N)
        dy = p[:, :, 1:2] - pt[:, 1:2, :]
        dz = p[:, :, 2:3] - pt[:, 2:3, :]
        # Coordinate-wise differences keep exact zeros on the diagonal.
        el_s = scale * jnp.sqrt(dx * dx + dy * dy + dz * dz)         # (TB, TN, N)

        # ---- Expand to lane-dense (TB, TN, N*K) on the MXU (0/1 matrix, so
        #      exact under HIGHEST); replication cost moves off the VPU/EUP ----
        el_exp = jnp.dot(el_s.reshape(tb * tn, n), expand_ref[...],
                         preferred_element_type=jnp.float32,
                         precision=lax.Precision.HIGHEST).reshape(tb, tn, nk)

        # ---- Gaussian RBF epilogue: 3 VALU ops + 1 EUP exp per element -------
        t = el_exp - centers_ref[...][None]                          # (TB, TN, NK)
        ef_ref[...] = jnp.exp(-(t * t)).astype(ef_ref.dtype)         # lane-dense store

    return _kernel


# ----------------------------------------------------------------------------
# Tile selection
# ----------------------------------------------------------------------------
def _pick_tiles(B, N, K, budget_bytes, batch_tile=None, atom_tile=None):
    """Pick (TB, TN): TB | B, TN | N, ef block TB*TN*N*K*4 <= budget_bytes.

    Also guarantees >= 2 grid steps when B >= 2 so the parallel axes can be
    sharded across the two TensorCores of a v7x chip.
    """
    row_bytes = N * K * 4                # one ef query-atom row
    mol_bytes = N * row_bytes            # one molecule's full ef slab

    if atom_tile is not None:
        TN = atom_tile
    elif mol_bytes <= budget_bytes or N % 8 != 0:
        TN = N                           # no atom tiling needed / possible
    else:
        TN = max(8, min(N, (budget_bytes // row_bytes) // 8 * 8))
        while N % TN != 0:
            TN -= 8
        TN = max(TN, 8)

    if batch_tile is not None:
        TB = batch_tile
    else:
        blk_bytes = TN * row_bytes
        TB = max(1, min(B, budget_bytes // max(blk_bytes, 1)))
        while B % TB != 0:
            TB -= 1
        # Megacore: avoid a single-step grid (would idle one v7x TensorCore).
        if (B // TB) * (N // TN) < 2 and B >= 2:
            TB = max(1, B // 2)
            while B % TB != 0:
                TB -= 1

    return TB, TN


# ----------------------------------------------------------------------------
# Wrapper
# ----------------------------------------------------------------------------
def mol2graph_forward(z, pos, emb_table, centers, coeff, *,
                      batch_tile=None, atom_tile=None,
                      ef_block_budget_bytes=8 << 20,
                      ef_dtype=jnp.float32):
    """z: (B, N) int, pos: (B, N, 3) f32 -> (emb1 (B,N,H) f32, ef (B,N,N,K))."""
    B, N = z.shape
    V, H = emb_table.shape
    K = centers.shape[-1]
    NK = N * K

    TB, TN = _pick_tiles(B, N, K, ef_block_budget_bytes, batch_tile, atom_tile)
    assert B % TB == 0 and N % TN == 0, "tiles must divide (B, N)"

    scale = math.sqrt(-float(coeff))

    # Wrapper-side layout plumbing (all tiny vs. the N^2*K ef writeback).
    z3 = z.reshape(B, N, 1).astype(jnp.int32)                          # (B, N, 1)
    pos = pos.astype(jnp.float32)
    pos_t = jnp.transpose(pos, (0, 2, 1))                              # (B, 3, N)
    centers_s = (centers.astype(jnp.float32) * scale).reshape(1, K)
    centers_tiled = jnp.tile(centers_s, (1, N))                        # (1, NK)
    expand = (jnp.arange(NK, dtype=jnp.int32)[None, :] // K ==
              jnp.arange(N, dtype=jnp.int32)[:, None]).astype(jnp.float32)  # (N, NK)

    # Explicit VMEM limit: double-buffered blocks + constants + margin,
    # capped at 48 MiB (legal on v7x's 64 MiB, overrides v5e's 16 MiB default).
    ef_bytes = jnp.dtype(ef_dtype).itemsize
    ef_blk = TB * TN * NK * ef_bytes
    emb_blk = TB * TN * H * 4
    in_blk = TB * TN * 4 + TB * TN * 3 * 4 + TB * 3 * N * 4
    const_blk = V * H * 4 + NK * 4 + N * NK * 4
    need = 2 * (ef_blk + emb_blk + in_blk + const_blk) + (4 << 20)
    vmem_limit = int(min(max(need, 32 << 20), 48 << 20))

    emb1, ef_flat = pl.pallas_call(
        _make_fused_kernel(scale),
        out_shape=(
            jax.ShapeDtypeStruct((B, N, H), jnp.float32),
            jax.ShapeDtypeStruct((B, N, NK), ef_dtype),
        ),
        grid=(B // TB, N // TN),
        in_specs=[
            pl.BlockSpec((TB, TN, 1), lambda b, i: (b, i, 0)),
            pl.BlockSpec((TB, TN, 3), lambda b, i: (b, i, 0)),
            pl.BlockSpec((TB, 3, N), lambda b, i: (b, 0, 0)),
            pl.BlockSpec((V, H), lambda b, i: (0, 0)),
            pl.BlockSpec((1, NK), lambda b, i: (0, 0)),
            pl.BlockSpec((N, NK), lambda b, i: (0, 0)),
        ],
        out_specs=(
            pl.BlockSpec((TB, TN, H), lambda b, i: (b, i, 0)),
            pl.BlockSpec((TB, TN, NK), lambda b, i: (b, i, 0)),
        ),
        compiler_params=pltpu.CompilerParams(
            dimension_semantics=("parallel", "parallel"),
            vmem_limit_bytes=vmem_limit),
    )(z3, pos, pos_t, emb_table.astype(jnp.float32), centers_tiled, expand)

    ef = ef_flat.reshape(B, N, N, K)          # free contiguous view
    return emb1, ef


# ----------------------------------------------------------------------------
# Deterministic parameter construction (synthetic, no checkpoint loading)
# ----------------------------------------------------------------------------
def init_params(key, max_z, z_hidden_dim, ef_dim, rbound_upper):
    (k_emb,) = jax.random.split(key, 1)
    emb_table = jax.random.normal(k_emb, (max_z + 1, z_hidden_dim), jnp.float32)
    # padding_idx=0 -> zero row
    emb_table = emb_table.at[0].set(0.0)
    # Gaussian smearing centers and coefficient (rbf="gauss")
    centers = jnp.linspace(0.0, rbound_upper, ef_dim, dtype=jnp.float32)
    delta = float(rbound_upper) / (ef_dim - 1)
    coeff = -0.5 / (delta * delta)
    return emb_table, centers, coeff


# ----------------------------------------------------------------------------
# Reference (plain JAX) for a quick sanity check
# ----------------------------------------------------------------------------
def reference_forward(z, pos, emb_table, centers, coeff):
    emb1 = jnp.take(emb_table, z, axis=0)
    ev = pos[:, :, None, :] - pos[:, None, :, :]
    el = jnp.sqrt(jnp.sum(ev * ev, axis=-1))
    diff = el[..., None] - centers[None, None, None, :]
    ef = jnp.exp(coeff * diff * diff)
    return emb1, ef


if __name__ == "__main__":
    # Small shapes consistent with the module's forward.
    B, N = 2, 8
    z_hidden_dim = 32
    ef_dim = 16
    max_z = 10
    rbound_upper = 5.0

    key = jax.random.PRNGKey(0)
    k_z, k_pos, k_par = jax.random.split(key, 3)

    z = jax.random.randint(k_z, (B, N), 0, max_z + 1, dtype=jnp.int32)
    pos = jax.random.normal(k_pos, (B, N, 3), jnp.float32) * 2.0

    emb_table, centers, coeff = init_params(k_par, max_z, z_hidden_dim,
                                            ef_dim, rbound_upper)

    emb1, ef = mol2graph_forward(z, pos, emb_table, centers, coeff)
    emb1, ef = jax.block_until_ready((emb1, ef))

    # Sanity-check against a pure-JAX reference.
    emb1_ref, ef_ref = reference_forward(z, pos, emb_table, centers, coeff)
    assert emb1.shape == (B, N, z_hidden_dim)
    assert ef.shape == (B, N, N, ef_dim)
    assert jnp.allclose(emb1, emb1_ref, atol=1e-5, rtol=1e-5)
    assert jnp.allclose(ef, ef_ref, atol=1e-5, rtol=1e-5)

    print("KERNEL_OK")
</pallas_src>

<mosaic_0001>
module attributes {stable_mosaic.version = 11 : i64} {
  func.func @_kernel(%arg0: i32, %arg1: i32, %arg2: memref<1x8x1xi32, #tpu.memory_space<vmem>>, %arg3: memref<1x8x3xf32, #tpu.memory_space<vmem>>, %arg4: memref<1x3x8xf32, #tpu.memory_space<vmem>>, %arg5: memref<11x32xf32, #tpu.memory_space<vmem>>, %arg6: memref<1x128xf32, #tpu.memory_space<vmem>>, %arg7: memref<8x128xf32, #tpu.memory_space<vmem>>, %arg8: memref<1x8x32xf32, #tpu.memory_space<vmem>>, %arg9: memref<1x8x128xf32, #tpu.memory_space<vmem>>) attributes {dimension_semantics = [#tpu.dimension_semantics<parallel>, #tpu.dimension_semantics<parallel>], iteration_bounds = array<i64: 2, 1>, scalar_prefetch = 0 : i64, scratch_operands = 0 : i64, tpu.core_type = #tpu.core_type<tc>, window_params = [{transform_indices = @transform_0, window_bounds = array<i64: 1, 8, 1>}, {transform_indices = @transform_1, window_bounds = array<i64: 1, 8, 3>}, {transform_indices = @transform_2, window_bounds = array<i64: 1, 3, 8>}, {pipeline_mode = #tpu.pipeline_mode<synchronous>, transform_indices = @transform_3, window_bounds = array<i64: 11, 32>}, {pipeline_mode = #tpu.pipeline_mode<synchronous>, transform_indices = @transform_4, window_bounds = array<i64: 1, 128>}, {pipeline_mode = #tpu.pipeline_mode<synchronous>, transform_indices = @transform_5, window_bounds = array<i64: 8, 128>}, {transform_indices = @transform_6, window_bounds = array<i64: 1, 8, 32>}, {transform_indices = @transform_7, window_bounds = array<i64: 1, 8, 128>}]} {
    %c0 = arith.constant 0 : index
    %c0_0 = arith.constant 0 : index
    %c0_1 = arith.constant 0 : index
    %0 = vector.load %arg2[%c0, %c0_0, %c0_1] : memref<1x8x1xi32, #tpu.memory_space<vmem>>, vector<1x8x1xi32>
    %1 = vector.shape_cast %0 : vector<1x8x1xi32> to vector<8x1xi32>
    %2 = tpu.iota {dimensions = array<i32: 1>} : vector<8x11xi32>
    %3 = vector.broadcast %1 : vector<8x1xi32> to vector<8x11xi32>
    %4 = arith.cmpi eq, %3, %2 : vector<8x11xi32>
    %5 = arith.extui %4 : vector<8x11xi1> to vector<8x11xi32>
    %6 = arith.sitofp %5 : vector<8x11xi32> to vector<8x11xf32>
    %c0_2 = arith.constant 0 : index
    %c0_3 = arith.constant 0 : index
    %7 = vector.load %arg5[%c0_2, %c0_3] : memref<11x32xf32, #tpu.memory_space<vmem>>, vector<11x32xf32>
    %cst = arith.constant dense<0.000000e+00> : vector<8x32xf32>
    %8 = tpu.matmul %6, %7, %cst {dimension_numbers = #tpu.dot_dimension_numbers<[1], [0], [0], [1], [0, 0, 1, 1], [], []>, precision = #tpu.contract_precision<fp32>} : vector<8x11xf32>, vector<11x32xf32>, vector<8x32xf32> -> vector<8x32xf32>
    %9 = vector.shape_cast %8 : vector<8x32xf32> to vector<1x8x32xf32>
    %c0_4 = arith.constant 0 : index
    %c0_5 = arith.constant 0 : index
    %c0_6 = arith.constant 0 : index
    %10 = vector.load %arg8[%c0_4, %c0_5, %c0_6] : memref<1x8x32xf32, #tpu.memory_space<vmem>>, vector<1x8x32xf32>
    tpu.vector_store %arg8[%c0_4, %c0_5, %c0_6], %9 {strides = array<i32>} : memref<1x8x32xf32, #tpu.memory_space<vmem>>, vector<1x8x32xf32>,
    %c0_7 = arith.constant 0 : index
    %c0_8 = arith.constant 0 : index
    %c0_9 = arith.constant 0 : index
    %11 = vector.load %arg3[%c0_7, %c0_8, %c0_9] : memref<1x8x3xf32, #tpu.memory_space<vmem>>, vector<1x8x3xf32>
    %c0_10 = arith.constant 0 : index
    %c0_11 = arith.constant 0 : index
    %c0_12 = arith.constant 0 : index
    %12 = vector.load %arg4[%c0_10, %c0_11, %c0_12] : memref<1x3x8xf32, #tpu.memory_space<vmem>>, vector<1x3x8xf32>
    %13 = vector.extract_strided_slice %11 {offsets = [0, 0, 0], sizes = [1, 8, 1], strides = [1, 1, 1]} : vector<1x8x3xf32> to vector<1x8x1xf32>
    %14 = vector.extract_strided_slice %12 {offsets = [0, 0, 0], sizes = [1, 1, 8], strides = [1, 1, 1]} : vector<1x3x8xf32> to vector<1x1x8xf32>
    %15 = vector.broadcast %13 : vector<1x8x1xf32> to vector<1x8x8xf32>
    %16 = vector.broadcast %14 : vector<1x1x8xf32> to vector<1x8x8xf32>
    %17 = arith.subf %15, %16 : vector<1x8x8xf32>
    %18 = vector.extract_strided_slice %11 {offsets = [0, 0, 1], sizes = [1, 8, 1], strides = [1, 1, 1]} : vector<1x8x3xf32> to vector<1x8x1xf32>
    %19 = vector.extract_strided_slice %12 {offsets = [0, 1, 0], sizes = [1, 1, 8], strides = [1, 1, 1]} : vector<1x3x8xf32> to vector<1x1x8xf32>
    %20 = vector.broadcast %18 : vector<1x8x1xf32> to vector<1x8x8xf32>
    %21 = vector.broadcast %19 : vector<1x1x8xf32> to vector<1x8x8xf32>
    %22 = arith.subf %20, %21 : vector<1x8x8xf32>
    %23 = vector.extract_strided_slice %11 {offsets = [0, 0, 2], sizes = [1, 8, 1], strides = [1, 1, 1]} : vector<1x8x3xf32> to vector<1x8x1xf32>
    %24 = vector.extract_strided_slice %12 {offsets = [0, 2, 0], sizes = [1, 1, 8], strides = [1, 1, 1]} : vector<1x3x8xf32> to vector<1x1x8xf32>
    %25 = vector.broadcast %23 : vector<1x8x1xf32> to vector<1x8x8xf32>
    %26 = vector.broadcast %24 : vector<1x1x8xf32> to vector<1x8x8xf32>
    %27 = arith.subf %25, %26 : vector<1x8x8xf32>
    %28 = arith.mulf %17, %17 : vector<1x8x8xf32>
    %29 = arith.mulf %22, %22 : vector<1x8x8xf32>
    %30 = arith.addf %28, %29 : vector<1x8x8xf32>
    %31 = arith.mulf %27, %27 : vector<1x8x8xf32>
    %32 = arith.addf %30, %31 : vector<1x8x8xf32>
    %33 = math.sqrt %32 : vector<1x8x8xf32>
    %cst_13 = arith.constant 2.12132025 : f32
    %34 = vector.broadcast %cst_13 : f32 to vector<1x8x8xf32>
    %35 = arith.mulf %34, %33 : vector<1x8x8xf32>
    %36 = vector.shape_cast %35 : vector<1x8x8xf32> to vector<8x8xf32>
    %c0_14 = arith.constant 0 : index
    %c0_15 = arith.constant 0 : index
    %37 = vector.load %arg7[%c0_14, %c0_15] : memref<8x128xf32, #tpu.memory_space<vmem>>, vector<8x128xf32>
    %cst_16 = arith.constant dense<0.000000e+00> : vector<8x128xf32>
    %38 = tpu.matmul %36, %37, %cst_16 {dimension_numbers = #tpu.dot_dimension_numbers<[1], [0], [0], [1], [0, 0, 1, 1], [], []>, precision = #tpu.contract_precision<fp32>} : vector<8x8xf32>, vector<8x128xf32>, vector<8x128xf32> -> vector<8x128xf32>
    %39 = vector.shape_cast %38 : vector<8x128xf32> to vector<1x8x128xf32>
    %c0_17 = arith.constant 0 : index
    %c0_18 = arith.constant 0 : index
    %40 = vector.load %arg6[%c0_17, %c0_18] : memref<1x128xf32, #tpu.memory_space<vmem>>, vector<1x128xf32>
    %41 = vector.shape_cast %40 : vector<1x128xf32> to vector<1x1x128xf32>
    %42 = vector.broadcast %41 : vector<1x1x128xf32> to vector<1x8x128xf32>
    %43 = arith.subf %39, %42 : vector<1x8x128xf32>
    %44 = arith.mulf %43, %43 : vector<1x8x128xf32>
    %cst_19 = arith.constant 0.000000e+00 : f32
    %45 = vector.broadcast %cst_19 : f32 to vector<1x8x128xf32>
    %46 = arith.subf %45, %44 : vector<1x8x128xf32>
    %47 = math.exp %46 : vector<1x8x128xf32>
    %c0_20 = arith.constant 0 : index
    %c0_21 = arith.constant 0 : index
    %c0_22 = arith.constant 0 : index
    %48 = vector.load %arg9[%c0_20, %c0_21, %c0_22] : memref<1x8x128xf32, #tpu.memory_space<vmem>>, vector<1x8x128xf32>
    tpu.vector_store %arg9[%c0_20, %c0_21, %c0_22], %47 {strides = array<i32>} : memref<1x8x128xf32, #tpu.memory_space<vmem>>, vector<1x8x128xf32>,
    return
  }
  func.func @transform_0(%arg0: i32, %arg1: i32) -> (i32, i32, i32) {
    %c0_i32 = arith.constant 0 : i32
    %c0_i32_0 = arith.constant 0 : i32
    return %arg0, %arg1, %c0_i32 : i32, i32, i32
  }
  func.func @transform_1(%arg0: i32, %arg1: i32) -> (i32, i32, i32) {
    %c0_i32 = arith.constant 0 : i32
    %c0_i32_0 = arith.constant 0 : i32
    return %arg0, %arg1, %c0_i32 : i32, i32, i32
  }
  func.func @transform_2(%arg0: i32, %arg1: i32) -> (i32, i32, i32) {
    %c0_i32 = arith.constant 0 : i32
    %c0_i32_0 = arith.constant 0 : i32
    %c0_i32_1 = arith.constant 0 : i32
    return %arg0, %c0_i32, %c0_i32_0 : i32, i32, i32
  }
  func.func @transform_3(%arg0: i32, %arg1: i32) -> (i32, i32) {
    %c0_i32 = arith.constant 0 : i32
    %c0_i32_0 = arith.constant 0 : i32
    %c0_i32_1 = arith.constant 0 : i32
    return %c0_i32, %c0_i32_0 : i32, i32
  }
  func.func @transform_4(%arg0: i32, %arg1: i32) -> (i32, i32) {
    %c0_i32 = arith.constant 0 : i32
    %c0_i32_0 = arith.constant 0 : i32
    %c0_i32_1 = arith.constant 0 : i32
    return %c0_i32, %c0_i32_0 : i32, i32
  }
  func.func @transform_5(%arg0: i32, %arg1: i32) -> (i32, i32) {
    %c0_i32 = arith.constant 0 : i32
    %c0_i32_0 = arith.constant 0 : i32
    %c0_i32_1 = arith.constant 0 : i32
    return %c0_i32, %c0_i32_0 : i32, i32
  }
  func.func @transform_6(%arg0: i32, %arg1: i32) -> (i32, i32, i32) {
    %c0_i32 = arith.constant 0 : i32
    %c0_i32_0 = arith.constant 0 : i32
    return %arg0, %arg1, %c0_i32 : i32, i32, i32
  }
  func.func @transform_7(%arg0: i32, %arg1: i32) -> (i32, i32, i32) {
    %c0_i32 = arith.constant 0 : i32
    %c0_i32_0 = arith.constant 0 : i32
    return %arg0, %arg1, %c0_i32 : i32, i32, i32
  }
}

</mosaic_0001>

<llo_original>
// kernel: tpu_custom_call.1
$region0: #{tpu_custom_call.1}
  #allocation0 [shape = 'u32[]', space=smem, size = 0x4, offset = 0x4, fixed_abs, tag = 'smem constant byte address 0x4 - core index']
  #allocation1 [shape = 'u32[72,128]{1,0:T(1,128)}', space=vmem, size = 0x9000, scoped, tag = 'internal scratch']
  %s0 = inlined_call_operand.vmem [shape: s32[2,8,1], index: 0, kind: input, shape index: {}]
  %s1 = inlined_call_operand.vmem [shape: f32[2,8,3], index: 1, kind: input, shape index: {}]
  %s2 = inlined_call_operand.vmem [shape: f32[2,3,8], index: 2, kind: input, shape index: {}]
  %s3 = inlined_call_operand.vmem [shape: f32[11,32], index: 3, kind: input, shape index: {}]
  %s4 = inlined_call_operand.vmem [shape: f32[1,128], index: 4, kind: input, shape index: {}]
  %s5 = inlined_call_operand.vmem [shape: f32[8,128], index: 5, kind: input, shape index: {}]
  %s6 = inlined_call_operand.hbm [shape: f32[2,8,32], index: 6, kind: output, shape index: {0}]
  %s7 = inlined_call_operand.hbm [shape: f32[2,8,128], index: 7, kind: output, shape index: {1}]
  %8 = xla_tuple %s6, %s7
  %s9 = sld [smem:[#allocation0]]
  $region65: #{tpu_custom_call.1} parent=0
    _
  %s11 = ssub.s32 1, %s9
  %s12 = scalar_select 0, %s11, %s9
  $region1: #{tpu_custom_call.1} parent=0
    #allocation2 [shape = 'u8[8192]{0}', space=vmem, size = 0x2000, scoped, tag = 'output window, operand 0']
    #allocation3 [shape = 's32[2]{0}', space=sflag, size = 0x8, scoped, tag = 'scoped memory for tpu_custom_call.1']
    #allocation4 [shape = 'u8[8192]{0}', space=vmem, size = 0x2000, scoped, tag = 'output window, operand 1']
    #allocation5 [shape = 's32[2]{0}', space=sflag, size = 0x8, scoped, tag = 'scoped memory for tpu_custom_call.1']
    %13 = vsyncpa [#allocation3], 0
    %s14 = scalar_lea.sflag [#allocation3], 1
    %15 = vsyncpa %s14, 0
    %16 = vsyncpa [#allocation5], 0
    %s17 = scalar_lea.sflag [#allocation5], 1
    %18 = vsyncpa %s17, 0
    loop: start=0, step=1, limit=4
    $region2: #{tpu_custom_call.1} parent=1 // loop_pre_header
      _
    $region3: #{tpu_custom_call.1} parent=1 // loop_header
      %s20 = sphi 0, %s24
      %p21 = scmp.ge.s32.totalorder %s20, 4
      %s27 = sphi 0, %s39
      %s28 = sphi 0, %s35
      %s29 = sphi 0, %s27
      %s30 = sphi 0, %s28
      %s31 = sphi 0, %s29
      %s32 = sphi 0, %s30
      %s44 = sphi 0, %s46
      %s47 = sphi 0, %s44
      %s48 = sphi 0, %s47
      %s64 = sphi 0, %s48
      %s72 = sphi 0, %s74
      %s75 = sphi 0, %s72
      %s76 = sphi 0, %s75
      %s92 = sphi 0, %s76
      %s98 = sphi 0, %s100
      %s101 = sphi 0, %s98
      %s102 = sphi 0, %s101
      %s118 = sphi 0, %s102
      %s122 = sphi 0, %s122
      %s124 = sphi 0, %s122
      %s125 = sphi 0, %s124
      %s139 = sphi 0, %s125
      %s143 = sphi 0, %s143
      %s145 = sphi 0, %s143
      %s146 = sphi 0, %s145
      %s160 = sphi 0, %s146
      %s164 = sphi 0, %s164
      %s166 = sphi 0, %s164
      %s167 = sphi 0, %s166
      %s181 = sphi 0, %s167
      %s189 = sphi 0, %s191
      %s192 = sphi 0, %s189
      %s193 = sphi 0, %s192
      %s209 = sphi 0, %s193
      %s217 = sphi 0, %s219
      %s220 = sphi 0, %s217
      %s221 = sphi 0, %s220
      %s237 = sphi 0, %s221
    $region4: #{tpu_custom_call.1} parent=1 // loop_header_branch
      %23 = sbr.rel (%p21) target = $region8
    $region5: #{tpu_custom_call.1} parent=1 // loop_body
      %s25 = ssub.s32 %s20, 1
      %s26 = ssub.s32 %s20, 2
      %s33 = sadd.s32 1, %s28
      %p34 = scmp.ge.s32.totalorder %s33, 1
      %s35 = scalar_select %p34, 0, %s33
      %s36 = sadd.s32 1, %s27
      %s37 = scalar_select %p34, %s36, %s27
      %p38 = scmp.ge.s32.totalorder %s37, 2
      %s39 = scalar_select %p38, 0, %s37
      %s40 = ssub.s32 %s27, %s39
      %s41 = ssub.s32 %s28, %s35
      %s42 = sor.u32 %s40, %s41
      %p43 = scmp.eq.s32.totalorder %s42, 0
      %s45 = sadd.s32 %s44, 1
      %s46 = scalar_select %p43, %s44, %s45
      %p49 = pneg %p43
      %p50 = scmp.eq.s32.totalorder %s20, 1
      %p51 = por %p49, %p50
      %p52 = scmp.ne.s32.totalorder %s44, %s47
      %p53 = scmp.eq.s32.totalorder %s20, 0
      %p54 = por %p52, %p53
      %p55 = scmp.ne.s32.totalorder %s44, %s47
      %p56 = scmp.eq.s32.totalorder %s25, 1
      %p57 = por %p55, %p56
      %p58 = scmp.ne.s32.totalorder %s47, %s48
      %p59 = scmp.eq.s32.totalorder %s25, 0
      %p60 = por %p58, %p59
      %p61 = scmp.ne.s32.totalorder %s47, %s48
      %p62 = scmp.eq.s32.totalorder %s26, 1
      %p63 = por %p61, %p62
      %p65 = scmp.ne.s32.totalorder %s48, %s64
      %p66 = scmp.eq.s32.totalorder %s26, 0
      %p67 = por %p65, %p66
      %s68 = ssub.s32 %s27, %s39
      %s69 = ssub.s32 %s28, %s35
      %s70 = sor.u32 %s68, %s69
      %p71 = scmp.eq.s32.totalorder %s70, 0
      %s73 = sadd.s32 %s72, 1
      %s74 = scalar_select %p71, %s72, %s73
      %p77 = pneg %p71
      %p78 = scmp.eq.s32.totalorder %s20, 1
      %p79 = por %p77, %p78
      %p80 = scmp.ne.s32.totalorder %s72, %s75
      %p81 = scmp.eq.s32.totalorder %s20, 0
      %p82 = por %p80, %p81
      %p83 = scmp.ne.s32.totalorder %s72, %s75
      %p84 = scmp.eq.s32.totalorder %s25, 1
      %p85 = por %p83, %p84
      %p86 = scmp.ne.s32.totalorder %s75, %s76
      %p87 = scmp.eq.s32.totalorder %s25, 0
      %p88 = por %p86, %p87
      %p89 = scmp.ne.s32.totalorder %s75, %s76
      %p90 = scmp.eq.s32.totalorder %s26, 1
      %p91 = por %p89, %p90
      %p93 = scmp.ne.s32.totalorder %s76, %s92
      %p94 = scmp.eq.s32.totalorder %s26, 0
      %p95 = por %p93, %p94
      %s96 = ssub.s32 %s27, %s39
      %p97 = scmp.eq.s32.totalorder %s96, 0
      %s99 = sadd.s32 %s98, 1
      %s100 = scalar_select %p97, %s98, %s99
      %p103 = pneg %p97
      %p104 = scmp.eq.s32.totalorder %s20, 1
      %p105 = por %p103, %p104
      %p106 = scmp.ne.s32.totalorder %s98, %s101
      %p107 = scmp.eq.s32.totalorder %s20, 0
      %p108 = por %p106, %p107
      %p109 = scmp.ne.s32.totalorder %s98, %s101
      %p110 = scmp.eq.s32.totalorder %s25, 1
      %p111 = por %p109, %p110
      %p112 = scmp.ne.s32.totalorder %s101, %s102
      %p113 = scmp.eq.s32.totalorder %s25, 0
      %p114 = por %p112, %p113
      %p115 = scmp.ne.s32.totalorder %s101, %s102
      %p116 = scmp.eq.s32.totalorder %s26, 1
      %p117 = por %p115, %p116
      %p119 = scmp.ne.s32.totalorder %s102, %s118
      %p120 = scmp.eq.s32.totalorder %s26, 0
      %p121 = por %p119, %p120
      %s123 = sadd.s32 %s122, 1
      %p126 = scmp.eq.s32.totalorder %s20, 1
      %p127 = scmp.ne.s32.totalorder %s122, %s124
      %p128 = scmp.eq.s32.totalorder %s20, 0
      %p129 = por %p127, %p128
      %p130 = scmp.ne.s32.totalorder %s122, %s124
      %p131 = scmp.eq.s32.totalorder %s25, 1
      %p132 = por %p130, %p131
      %p133 = scmp.ne.s32.totalorder %s124, %s125
      %p134 = scmp.eq.s32.totalorder %s25, 0
      %p135 = por %p133, %p134
      %p136 = scmp.ne.s32.totalorder %s124, %s125
      %p137 = scmp.eq.s32.totalorder %s26, 1
      %p138 = por %p136, %p137
      %p140 = scmp.ne.s32.totalorder %s125, %s139
      %p141 = scmp.eq.s32.totalorder %s26, 0
      %p142 = por %p140, %p141
      %s144 = sadd.s32 %s143, 1
      %p147 = scmp.eq.s32.totalorder %s20, 1
      %p148 = scmp.ne.s32.totalorder %s143, %s145
      %p149 = scmp.eq.s32.totalorder %s20, 0
      %p150 = por %p148, %p149
      %p151 = scmp.ne.s32.totalorder %s143, %s145
      %p152 = scmp.eq.s32.totalorder %s25, 1
      %p153 = por %p151, %p152
      %p154 = scmp.ne.s32.totalorder %s145, %s146
      %p155 = scmp.eq.s32.totalorder %s25, 0
      %p156 = por %p154, %p155
      %p157 = scmp.ne.s32.totalorder %s145, %s146
      %p158 = scmp.eq.s32.totalorder %s26, 1
      %p159 = por %p157, %p158
      %p161 = scmp.ne.s32.totalorder %s146, %s160
      %p162 = scmp.eq.s32.totalorder %s26, 0
      %p163 = por %p161, %p162
      %s165 = sadd.s32 %s164, 1
      %p168 = scmp.eq.s32.totalorder %s20, 1
      %p169 = scmp.ne.s32.totalorder %s164, %s166
      %p170 = scmp.eq.s32.totalorder %s20, 0
      %p171 = por %p169, %p170
      %p172 = scmp.ne.s32.totalorder %s164, %s166
      %p173 = scmp.eq.s32.totalorder %s25, 1
      %p174 = por %p172, %p173
      %p175 = scmp.ne.s32.totalorder %s166, %s167
      %p176 = scmp.eq.s32.totalorder %s25, 0
      %p177 = por %p175, %p176
      %p178 = scmp.ne.s32.totalorder %s166, %s167
      %p179 = scmp.eq.s32.totalorder %s26, 1
      %p180 = por %p178, %p179
      %p182 = scmp.ne.s32.totalorder %s167, %s181
      %p183 = scmp.eq.s32.totalorder %s26, 0
      %p184 = por %p182, %p183
      %s185 = ssub.s32 %s27, %s39
      %s186 = ssub.s32 %s28, %s35
      %s187 = sor.u32 %s185, %s186
      %p188 = scmp.eq.s32.totalorder %s187, 0
      %s190 = sadd.s32 %s189, 1
      %s191 = scalar_select %p188, %s189, %s190
      %p194 = pneg %p188
      %p195 = scmp.eq.s32.totalorder %s20, 1
      %p196 = por %p194, %p195
      %p197 = scmp.ne.s32.totalorder %s189, %s192
      %p198 = scmp.eq.s32.totalorder %s20, 0
      %p199 = por %p197, %p198
      %p200 = scmp.ne.s32.totalorder %s189, %s192
      %p201 = scmp.eq.s32.totalorder %s25, 1
      %p202 = por %p200, %p201
      %p203 = scmp.ne.s32.totalorder %s192, %s193
      %p204 = scmp.eq.s32.totalorder %s25, 0
      %p205 = por %p203, %p204
      %p206 = scmp.ne.s32.totalorder %s192, %s193
      %p207 = scmp.eq.s32.totalorder %s26, 1
      %p208 = por %p206, %p207
      %p210 = scmp.ne.s32.totalorder %s193, %s209
      %p211 = scmp.eq.s32.totalorder %s26, 0
      %p212 = por %p210, %p211
      %s213 = ssub.s32 %s27, %s39
      %s214 = ssub.s32 %s28, %s35
      %s215 = sor.u32 %s213, %s214
      %p216 = scmp.eq.s32.totalorder %s215, 0
      %s218 = sadd.s32 %s217, 1
      %s219 = scalar_select %p216, %s217, %s218
      %p222 = pneg %p216
      %p223 = scmp.eq.s32.totalorder %s20, 1
      %p224 = por %p222, %p223
      %p225 = scmp.ne.s32.totalorder %s217, %s220
      %p226 = scmp.eq.s32.totalorder %s20, 0
      %p227 = por %p225, %p226
      %p228 = scmp.ne.s32.totalorder %s217, %s220
      %p229 = scmp.eq.s32.totalorder %s25, 1
      %p230 = por %p228, %p229
      %p231 = scmp.ne.s32.totalorder %s220, %s221
      %p232 = scmp.eq.s32.totalorder %s25, 0
      %p233 = por %p231, %p232
      %p234 = scmp.ne.s32.totalorder %s220, %s221
      %p235 = scmp.eq.s32.totalorder %s26, 1
      %p236 = por %p234, %p235
      %p238 = scmp.ne.s32.totalorder %s221, %s237
      %p239 = scmp.eq.s32.totalorder %s26, 0
      %p240 = por %p238, %p239
      %p241 = scmp.le.s32.totalorder 1, %s20
      %p242 = scmp.lt.s32.totalorder %s20, 3
      %p243 = pnand %p241, %p242
      %p244 = pneg %p243
      // Predicated region
      $region9: #{tpu_custom_call.1} parent=5 // pred_check
        _
      $region10: #{tpu_custom_call.1} parent=5 // pred_check_branch
        %246 = sbr.rel (%p243) target = $region12
      $region11: #{tpu_custom_call.1} parent=5 // pred_region
        %s247 = ssub.s32 %s20, 1
        // Predicated region
        $region13: #{tpu_custom_call.1} parent=11 // pred_check
          %p248 = pneg %p135
        $region14: #{tpu_custom_call.1} parent=11 // pred_check_branch
          %250 = sbr.rel (%p248) target = $region16
        $region15: #{tpu_custom_call.1} parent=11 // pred_region
          _
        $region16: #{tpu_custom_call.1} parent=11 // pred_fallthru
          _
        // Predicated region
        $region17: #{tpu_custom_call.1} parent=11 // pred_check
          %p251 = pneg %p156
        $region18: #{tpu_custom_call.1} parent=11 // pred_check_branch
          %253 = sbr.rel (%p251) target = $region20
        $region19: #{tpu_custom_call.1} parent=11 // pred_region
          _
        $region20: #{tpu_custom_call.1} parent=11 // pred_fallthru
          _
        // Predicated region
        $region21: #{tpu_custom_call.1} parent=11 // pred_check
          %p254 = pneg %p177
        $region22: #{tpu_custom_call.1} parent=11 // pred_check_branch
          %256 = sbr.rel (%p254) target = $region24
        $region23: #{tpu_custom_call.1} parent=11 // pred_region
          _
        $region24: #{tpu_custom_call.1} parent=11 // pred_fallthru
          _
      $region12: #{tpu_custom_call.1} parent=5 // pred_fallthru
        _
      %p257 = scmp.lt.s32.totalorder %s20, 2
      // Predicated region
      $region25: #{tpu_custom_call.1} parent=5 // pred_check
        %p258 = pneg %p257
      $region26: #{tpu_custom_call.1} parent=5 // pred_check_branch
        %260 = sbr.rel (%p258) target = $region28
      $region27: #{tpu_custom_call.1} parent=5 // pred_region
        // Predicated region
        $region29: #{tpu_custom_call.1} parent=27 // pred_check
          %p261 = pneg %p54
        $region30: #{tpu_custom_call.1} parent=27 // pred_check_branch
          %263 = sbr.rel (%p261) target = $region32
        $region31: #{tpu_custom_call.1} parent=27 // pred_region
          %p264 = scmp.lt.s32.totalorder %s27, 1
          %s265 = scalar_select %p264, %s27, 1
          %p266 = scmp.lt.s32.totalorder %s28, 0
          %s267 = scalar_select %p266, %s28, 0
          %s268 = sadd.s32 %s267, %s265
          %s269 = smul.addr %s268, 8
          %s270 = scalar_lea.vmem %s0, %s269
        $region32: #{tpu_custom_call.1} parent=27 // pred_fallthru
          _
        // Predicated region
        $region33: #{tpu_custom_call.1} parent=27 // pred_check
          %p271 = pneg %p82
        $region34: #{tpu_custom_call.1} parent=27 // pred_check_branch
          %273 = sbr.rel (%p271) target = $region36
        $region35: #{tpu_custom_call.1} parent=27 // pred_region
          %p274 = scmp.lt.s32.totalorder %s27, 1
          %s275 = scalar_select %p274, %s27, 1
          %p276 = scmp.lt.s32.totalorder %s28, 0
          %s277 = scalar_select %p276, %s28, 0
          %s278 = sadd.s32 %s277, %s275
          %s279 = smul.addr %s278, 8
          %s280 = scalar_lea.vmem %s1, %s279
        $region36: #{tpu_custom_call.1} parent=27 // pred_fallthru
          _
        // Predicated region
        $region37: #{tpu_custom_call.1} parent=27 // pred_check
          %p281 = pneg %p108
        $region38: #{tpu_custom_call.1} parent=27 // pred_check_branch
          %283 = sbr.rel (%p281) target = $region40
        $region39: #{tpu_custom_call.1} parent=27 // pred_region
          %p284 = scmp.lt.s32.totalorder %s27, 1
          %s285 = scalar_select %p284, %s27, 1
          %s286 = smul.addr %s285, 4
          %s287 = scalar_lea.vmem %s2, %s286
        $region40: #{tpu_custom_call.1} parent=27 // pred_fallthru
          _
      $region28: #{tpu_custom_call.1} parent=5 // pred_fallthru
        _
      %p288 = scmp.le.s32.totalorder 1, %s20
      %p289 = scmp.lt.s32.totalorder %s20, 3
      %p290 = pnand %p288, %p289
      %p291 = pneg %p290
      // Predicated region
      $region41: #{tpu_custom_call.1} parent=5 // pred_check
        _
      $region42: #{tpu_custom_call.1} parent=5 // pred_check_branch
        %293 = sbr.rel (%p290) target = $region44
      $region43: #{tpu_custom_call.1} parent=5 // pred_region
        %s294 = ssub.s32 %s20, 1
        %p295 = scmp.lt.s32.totalorder %s29, 1
        %s296 = scalar_select %p295, %s29, 1
        %p297 = scmp.lt.s32.totalorder %s30, 0
        %s298 = scalar_select %p297, %s30, 0
        %s299 = sadd.s32 %s298, %s296
        %s300 = smul.addr %s299, 8
        %s301 = scalar_lea.vmem %s0, %s300
        %p302 = pneg %p60
        %p303 = pneg %p57
        %p304 = scmp.lt.s32.totalorder %s29, 1
        %s305 = scalar_select %p304, %s29, 1
        %p306 = scmp.lt.s32.totalorder %s30, 0
        %s307 = scalar_select %p306, %s30, 0
        %s308 = sadd.s32 %s307, %s305
        %s309 = smul.addr %s308, 8
        %s310 = scalar_lea.vmem %s1, %s309
        %p311 = pneg %p88
        %p312 = pneg %p85
        %p313 = scmp.lt.s32.totalorder %s29, 1
        %s314 = scalar_select %p313, %s29, 1
        %s315 = smul.addr %s314, 4
        %s316 = scalar_lea.vmem %s2, %s315
        %p317 = pneg %p114
        %p318 = pneg %p111
        %p319 = pneg %p135
        %p320 = pneg %p132
        %p321 = pneg %p156
        %p322 = pneg %p153
        %p323 = pneg %p177
        %p324 = pneg %p174
        %p325 = pneg %p205
        %p326 = pneg %p202
        %s327 = sand.u32 %s192, 1
        %s328 = scalar_lea.sflag [#allocation3], %s327
        %s329 = sand.u32 %s192, 1
        %s330 = smul.addr %s329, 8
        %s331 = scalar_lea.vmem [#allocation2], %s330
        %p332 = pneg %p233
        %p333 = pneg %p230
        %s334 = sand.u32 %s220, 1
        %s335 = scalar_lea.sflag [#allocation5], %s334
        %s336 = sand.u32 %s220, 1
        %s337 = smul.addr %s336, 8
        %s338 = scalar_lea.vmem [#allocation4], %s337
        %p339 = scmp.lt.s32.totalorder %s29, 1
        %s340 = scalar_select %p339, %s29, 1
        %p341 = scmp.lt.s32.totalorder %s30, 0
        %s342 = scalar_select %p341, %s30, 0
        %s343 = sadd.s32 %s342, %s340
        %s344 = smul.addr %s343, 8
        %s345 = scalar_lea.vmem %s0, %s344
        %p346 = scmp.lt.s32.totalorder %s29, 1
        %s347 = scalar_select %p346, %s29, 1
        %p348 = scmp.lt.s32.totalorder %s30, 0
        %s349 = scalar_select %p348, %s30, 0
        %s350 = sadd.s32 %s349, %s347
        %s351 = smul.addr %s350, 8
        %s352 = scalar_lea.vmem %s1, %s351
        %p353 = scmp.lt.s32.totalorder %s29, 1
        %s354 = scalar_select %p353, %s29, 1
        %s355 = smul.addr %s354, 4
        %s356 = scalar_lea.vmem %s2, %s355
        %v357 = vld [vmem:[%s345] sm:$0xff]
        %v358 = vlaneseq
        %v359 = vand.u32 %v358, 127
        %360 = vset.pattern.permute.xlu0 0
        %361 = vperm.xlu0 %360, %v357
        %v362 = vpop.permute.xlu0 %361
        %vm363 = vcmp.eq.s32.totalorder %v362, %v359
        %v364 = vsel %vm363, 1, 0
        %v365 = vcvt.s32.f32 %v364
        %v366 = vld [vmem:[%s3] sm:$0xff]
        %v367 = vld [vmem:[%s3 + $0x8] sm:$0x7]
        %vm368 = vcmask 89088
        %v370 = vsel %vm368, %v365, 0
        %vm372 = vcmask 1042432
        %v374 = vsel %vm372, %v367, 0
        %376 = vmatpush.msra.mxu0 0.0
        %377 = vmatpush.msra.mxu0 0.0
        %378 = vmatpush.msra.mxu0 0.0
        %379 = vmatpush.msra.mxu0 0.0
        %380 = vmatpush.msra.mxu0 0.0
        %381 = vmatpush.msra.mxu0 0.0
        %382 = vmatpush.msra.mxu0 0.0
        %383 = vmatpush.msra.mxu0 0.0
        %384 = vmatpush.msra.mxu0 0.0
        %385 = vmatpush.msra.mxu0 0.0
        %386 = vmatpush.msra.mxu0 0.0
        %387 = vmatpush.msra.mxu0 0.0
        %388 = vmatpush.msra.mxu0 0.0
        %389 = vmatpush.msra.mxu0 0.0
        %v390 = vand.u32 %v374, 4294901760
        %391 = vmatpush.msra.mxu0 %v390
        %v392 = vand.u32 %v366, 4294901760
        %393 = vmatpush.msra.mxu0 %v392
        %v394 = vand.u32 %v370, 4294901760
        %v395 = vsub.f32 %v370, %v394
        %v396 = vand.u32 %v395, 4294901760
        %v397 = vsub.f32 %v395, %v396
        %v398 = vand.u32 %v397, 4294901760
        %399 = vmatmul.f32.gmra.mxu0 %v398
        %v400 = vpop.f32.mrf.mxu0
        %v401 = vadd.f32 0.0, %v400
        %402 = vdwg.mxu0
        %403 = vmatpush.msra.mxu0 0.0
        %404 = vmatpush.msra.mxu0 0.0
        %405 = vmatpush.msra.mxu0 0.0
        %406 = vmatpush.msra.mxu0 0.0
        %407 = vmatpush.msra.mxu0 0.0
        %408 = vmatpush.msra.mxu0 0.0
        %409 = vmatpush.msra.mxu0 0.0
        %410 = vmatpush.msra.mxu0 0.0
        %411 = vmatpush.msra.mxu0 0.0
        %412 = vmatpush.msra.mxu0 0.0
        %413 = vmatpush.msra.mxu0 0.0
        %414 = vmatpush.msra.mxu0 0.0
        %415 = vmatpush.msra.mxu0 0.0
        %416 = vmatpush.msra.mxu0 0.0
        %v417 = vand.u32 %v374, 4294901760
        %v418 = vsub.f32 %v374, %v417
        %v419 = vand.u32 %v418, 4294901760
        %v420 = vsub.f32 %v418, %v419
        %v421 = vand.u32 %v420, 4294901760
        %422 = vmatpush.msra.mxu0 %v421
        %v423 = vand.u32 %v366, 4294901760
        %v424 = vsub.f32 %v366, %v423
        %v425 = vand.u32 %v424, 4294901760
        %v426 = vsub.f32 %v424, %v425
        %v427 = vand.u32 %v426, 4294901760
        %428 = vmatpush.msra.mxu0 %v427
        %v429 = vand.u32 %v370, 4294901760
        %430 = vmatmul.f32.gmra.mxu0 %v429
        %v431 = vpop.f32.mrf.mxu0
        %v432 = vadd.f32 %v401, %v431
        %433 = vdwg.mxu0
        %434 = vmatpush.msra.mxu0 0.0
        %435 = vmatpush.msra.mxu0 0.0
        %436 = vmatpush.msra.mxu0 0.0
        %437 = vmatpush.msra.mxu0 0.0
        %438 = vmatpush.msra.mxu0 0.0
        %439 = vmatpush.msra.mxu0 0.0
        %440 = vmatpush.msra.mxu0 0.0
        %441 = vmatpush.msra.mxu0 0.0
        %442 = vmatpush.msra.mxu0 0.0
        %443 = vmatpush.msra.mxu0 0.0
        %444 = vmatpush.msra.mxu0 0.0
        %445 = vmatpush.msra.mxu0 0.0
        %446 = vmatpush.msra.mxu0 0.0
        %447 = vmatpush.msra.mxu0 0.0
        %v448 = vand.u32 %v374, 4294901760
        %v449 = vsub.f32 %v374, %v448
        %450 = vmatpush.msra.mxu0 %v449
        %v451 = vand.u32 %v366, 4294901760
        %v452 = vsub.f32 %v366, %v451
        %453 = vmatpush.msra.mxu0 %v452
        %v454 = vand.u32 %v370, 4294901760
        %v455 = vsub.f32 %v370, %v454
        %456 = vmatmul.f32.gmra.mxu0 %v455
        %v457 = vpop.f32.mrf.mxu0
        %v458 = vadd.f32 %v432, %v457
        %459 = vdwg.mxu0
        %460 = vmatpush.msra.mxu0 0.0
        %461 = vmatpush.msra.mxu0 0.0
        %462 = vmatpush.msra.mxu0 0.0
        %463 = vmatpush.msra.mxu0 0.0
        %464 = vmatpush.msra.mxu0 0.0
        %465 = vmatpush.msra.mxu0 0.0
        %466 = vmatpush.msra.mxu0 0.0
        %467 = vmatpush.msra.mxu0 0.0
        %468 = vmatpush.msra.mxu0 0.0
        %469 = vmatpush.msra.mxu0 0.0
        %470 = vmatpush.msra.mxu0 0.0
        %471 = vmatpush.msra.mxu0 0.0
        %472 = vmatpush.msra.mxu0 0.0
        %473 = vmatpush.msra.mxu0 0.0
        %v474 = vand.u32 %v374, 4294901760
        %475 = vmatpush.msra.mxu0 %v474
        %v476 = vand.u32 %v366, 4294901760
        %477 = vmatpush.msra.mxu0 %v476
        %v478 = vand.u32 %v370, 4294901760
        %v479 = vsub.f32 %v370, %v478
        %v480 = vand.u32 %v479, 4294901760
        %481 = vmatmul.f32.gmra.mxu0 %v480
        %v482 = vpop.f32.mrf.mxu0
        %v483 = vadd.f32 %v458, %v482
        %484 = vdwg.mxu0
        %485 = vmatpush.msra.mxu0 0.0
        %486 = vmatpush.msra.mxu0 0.0
        %487 = vmatpush.msra.mxu0 0.0
        %488 = vmatpush.msra.mxu0 0.0
        %489 = vmatpush.msra.mxu0 0.0
        %490 = vmatpush.msra.mxu0 0.0
        %491 = vmatpush.msra.mxu0 0.0
        %492 = vmatpush.msra.mxu0 0.0
        %493 = vmatpush.msra.mxu0 0.0
        %494 = vmatpush.msra.mxu0 0.0
        %495 = vmatpush.msra.mxu0 0.0
        %496 = vmatpush.msra.mxu0 0.0
        %497 = vmatpush.msra.mxu0 0.0
        %498 = vmatpush.msra.mxu0 0.0
        %v499 = vand.u32 %v374, 4294901760
        %v500 = vsub.f32 %v374, %v499
        %v501 = vand.u32 %v500, 4294901760
        %502 = vmatpush.msra.mxu0 %v501
        %v503 = vand.u32 %v366, 4294901760
        %v504 = vsub.f32 %v366, %v503
        %v505 = vand.u32 %v504, 4294901760
        %506 = vmatpush.msra.mxu0 %v505
        %v507 = vand.u32 %v370, 4294901760
        %508 = vmatmul.f32.gmra.mxu0 %v507
        %v509 = vpop.f32.mrf.mxu0
        %v510 = vadd.f32 %v483, %v509
        %511 = vdwg.mxu0
        %512 = vmatpush.msra.mxu0 0.0
        %513 = vmatpush.msra.mxu0 0.0
        %514 = vmatpush.msra.mxu0 0.0
        %515 = vmatpush.msra.mxu0 0.0
        %516 = vmatpush.msra.mxu0 0.0
        %517 = vmatpush.msra.mxu0 0.0
        %518 = vmatpush.msra.mxu0 0.0
        %519 = vmatpush.msra.mxu0 0.0
        %520 = vmatpush.msra.mxu0 0.0
        %521 = vmatpush.msra.mxu0 0.0
        %522 = vmatpush.msra.mxu0 0.0
        %523 = vmatpush.msra.mxu0 0.0
        %524 = vmatpush.msra.mxu0 0.0
        %525 = vmatpush.msra.mxu0 0.0
        %v526 = vand.u32 %v374, 4294901760
        %527 = vmatpush.msra.mxu0 %v526
        %v528 = vand.u32 %v366, 4294901760
        %529 = vmatpush.msra.mxu0 %v528
        %v530 = vand.u32 %v370, 4294901760
        %531 = vmatmul.f32.gmra.mxu0 %v530
        %v532 = vpop.f32.mrf.mxu0
        %v533 = vadd.f32 %v510, %v532
        %534 = vdwg.mxu0
        %vm535 = vcmask 261120
        %536 = vst.msk [vmem:[%s331] sm:$0xff] %vm535, %v533
        %v537 = vld [vmem:[%s352] sm:$0xff]
        %v538 = vld [vmem:[%s356] sm:$0x7]
        %540 = vset.pattern.permute.xlu0 0
        %541 = vperm.xlu0 %540, %v537
        %v542 = vpop.permute.xlu0 %541
        %v544 = vperm.slane %v538, 0
        %v545 = vsub.f32 %v542, %v544
        %546 = vset.pattern.permute.xlu0 1
        %547 = vperm.xlu0 %546, %v537
        %v548 = vpop.permute.xlu0 %547
        %v550 = vperm.slane %v538, 1
        %v551 = vsub.f32 %v548, %v550
        %552 = vset.pattern.permute.xlu0 2
        %553 = vperm.xlu0 %552, %v537
        %v554 = vpop.permute.xlu0 %553
        %v556 = vperm.slane %v538, 2
        %v557 = vsub.f32 %v554, %v556
        %v558 = vmul.f32 %v545, %v545
        %v559 = vmul.f32 %v551, %v551
        %v560 = vadd.f32 %v558, %v559
        %v561 = vmul.f32 %v557, %v557
        %v562 = vadd.f32 %v560, %v561
        %v563 = vrsqrt.pop %v562
        %v564 = vmul.f32 %v563, %v562
        %v565 = vmul.f32 %v564, %v563
        %v566 = vmul.f32 0.5, %v565
        %v567 = vsub.f32 1.5, %v566
        %v568 = vmul.f32 %v563, %v567
        %v569 = vmul.f32 %v562, %v568
        %vm570 = vcmp.eq.f32.partialorder %v562, inf
        %v571 = vsel %vm570, %v562, %v569
        %vm572 = vcmp.eq.f32.partialorder %v562, 0.0
        %v573 = vand.u32 %v562, 2147483648
        %v574 = vsel %vm572, %v573, %v571
        %v575 = vmul.f32 %v574, 2.1213202
        %v576 = vld [vmem:[%s5] sm:$0xff]
        %vm577 = vcmask 64512
        %v579 = vsel %vm577, %v575, 0
        %581 = vmatpush.msra.mxu0 0.0
        %582 = vmatpush.msra.mxu0 0.0
        %583 = vmatpush.msra.mxu0 0.0
        %584 = vmatpush.msra.mxu0 0.0
        %585 = vmatpush.msra.mxu0 0.0
        %586 = vmatpush.msra.mxu0 0.0
        %587 = vmatpush.msra.mxu0 0.0
        %588 = vmatpush.msra.mxu0 0.0
        %589 = vmatpush.msra.mxu0 0.0
        %590 = vmatpush.msra.mxu0 0.0
        %591 = vmatpush.msra.mxu0 0.0
        %592 = vmatpush.msra.mxu0 0.0
        %593 = vmatpush.msra.mxu0 0.0
        %594 = vmatpush.msra.mxu0 0.0
        %595 = vmatpush.msra.mxu0 0.0
        %v596 = vand.u32 %v576, 4294901760
        %597 = vmatpush.msra.mxu0 %v596
        %v598 = vand.u32 %v579, 4294901760
        %v599 = vsub.f32 %v579, %v598
        %v600 = vand.u32 %v599, 4294901760
        %v601 = vsub.f32 %v599, %v600
        %v602 = vand.u32 %v601, 4294901760
        %603 = vmatmul.f32.gmra.mxu0 %v602
        %v604 = vpop.f32.mrf.mxu0
        %v605 = vadd.f32 0.0, %v604
        %606 = vdwg.mxu0
        %607 = vmatpush.msra.mxu0 0.0
        %608 = vmatpush.msra.mxu0 0.0
        %609 = vmatpush.msra.mxu0 0.0
        %610 = vmatpush.msra.mxu0 0.0
        %611 = vmatpush.msra.mxu0 0.0
        %612 = vmatpush.msra.mxu0 0.0
        %613 = vmatpush.msra.mxu0 0.0
        %614 = vmatpush.msra.mxu0 0.0
        %615 = vmatpush.msra.mxu0 0.0
        %616 = vmatpush.msra.mxu0 0.0
        %617 = vmatpush.msra.mxu0 0.0
        %618 = vmatpush.msra.mxu0 0.0
        %619 = vmatpush.msra.mxu0 0.0
        %620 = vmatpush.msra.mxu0 0.0
        %621 = vmatpush.msra.mxu0 0.0
        %v622 = vand.u32 %v576, 4294901760
        %v623 = vsub.f32 %v576, %v622
        %v624 = vand.u32 %v623, 4294901760
        %v625 = vsub.f32 %v623, %v624
        %v626 = vand.u32 %v625, 4294901760
        %627 = vmatpush.msra.mxu0 %v626
        %v628 = vand.u32 %v579, 4294901760
        %629 = vmatmul.f32.gmra.mxu0 %v628
        %v630 = vpop.f32.mrf.mxu0
        %v631 = vadd.f32 %v605, %v630
        %632 = vdwg.mxu0
        %633 = vmatpush.msra.mxu0 0.0
        %634 = vmatpush.msra.mxu0 0.0
        %635 = vmatpush.msra.mxu0 0.0
        %636 = vmatpush.msra.mxu0 0.0
        %637 = vmatpush.msra.mxu0 0.0
        %638 = vmatpush.msra.mxu0 0.0
        %639 = vmatpush.msra.mxu0 0.0
        %640 = vmatpush.msra.mxu0 0.0
        %641 = vmatpush.msra.mxu0 0.0
        %642 = vmatpush.msra.mxu0 0.0
        %643 = vmatpush.msra.mxu0 0.0
        %644 = vmatpush.msra.mxu0 0.0
        %645 = vmatpush.msra.mxu0 0.0
        %646 = vmatpush.msra.mxu0 0.0
        %647 = vmatpush.msra.mxu0 0.0
        %v648 = vand.u32 %v576, 4294901760
        %v649 = vsub.f32 %v576, %v648
        %650 = vmatpush.msra.mxu0 %v649
        %v651 = vand.u32 %v579, 4294901760
        %v652 = vsub.f32 %v579, %v651
        %653 = vmatmul.f32.gmra.mxu0 %v652
        %v654 = vpop.f32.mrf.mxu0
        %v655 = vadd.f32 %v631, %v654
        %656 = vdwg.mxu0
        %657 = vmatpush.msra.mxu0 0.0
        %658 = vmatpush.msra.mxu0 0.0
        %659 = vmatpush.msra.mxu0 0.0
        %660 = vmatpush.msra.mxu0 0.0
        %661 = vmatpush.msra.mxu0 0.0
        %662 = vmatpush.msra.mxu0 0.0
        %663 = vmatpush.msra.mxu0 0.0
        %664 = vmatpush.msra.mxu0 0.0
        %665 = vmatpush.msra.mxu0 0.0
        %666 = vmatpush.msra.mxu0 0.0
        %667 = vmatpush.msra.mxu0 0.0
        %668 = vmatpush.msra.mxu0 0.0
        %669 = vmatpush.msra.mxu0 0.0
        %670 = vmatpush.msra.mxu0 0.0
        %671 = vmatpush.msra.mxu0 0.0
        %v672 = vand.u32 %v576, 4294901760
        %673 = vmatpush.msra.mxu0 %v672
        %v674 = vand.u32 %v579, 4294901760
        %v675 = vsub.f32 %v579, %v674
        %v676 = vand.u32 %v675, 4294901760
        %677 = vmatmul.f32.gmra.mxu0 %v676
        %v678 = vpop.f32.mrf.mxu0
        %v679 = vadd.f32 %v655, %v678
        %680 = vdwg.mxu0
        %681 = vmatpush.msra.mxu0 0.0
        %682 = vmatpush.msra.mxu0 0.0
        %683 = vmatpush.msra.mxu0 0.0
        %684 = vmatpush.msra.mxu0 0.0
        %685 = vmatpush.msra.mxu0 0.0
        %686 = vmatpush.msra.mxu0 0.0
        %687 = vmatpush.msra.mxu0 0.0
        %688 = vmatpush.msra.mxu0 0.0
        %689 = vmatpush.msra.mxu0 0.0
        %690 = vmatpush.msra.mxu0 0.0
        %691 = vmatpush.msra.mxu0 0.0
        %692 = vmatpush.msra.mxu0 0.0
        %693 = vmatpush.msra.mxu0 0.0
        %694 = vmatpush.msra.mxu0 0.0
        %695 = vmatpush.msra.mxu0 0.0
        %v696 = vand.u32 %v576, 4294901760
        %v697 = vsub.f32 %v576, %v696
        %v698 = vand.u32 %v697, 4294901760
        %699 = vmatpush.msra.mxu0 %v698
        %v700 = vand.u32 %v579, 4294901760
        %701 = vmatmul.f32.gmra.mxu0 %v700
        %v702 = vpop.f32.mrf.mxu0
        %v703 = vadd.f32 %v679, %v702
        %704 = vdwg.mxu0
        %705 = vmatpush.msra.mxu0 0.0
        %706 = vmatpush.msra.mxu0 0.0
        %707 = vmatpush.msra.mxu0 0.0
        %708 = vmatpush.msra.mxu0 0.0
        %709 = vmatpush.msra.mxu0 0.0
        %710 = vmatpush.msra.mxu0 0.0
        %711 = vmatpush.msra.mxu0 0.0
        %712 = vmatpush.msra.mxu0 0.0
        %713 = vmatpush.msra.mxu0 0.0
        %714 = vmatpush.msra.mxu0 0.0
        %715 = vmatpush.msra.mxu0 0.0
        %716 = vmatpush.msra.mxu0 0.0
        %717 = vmatpush.msra.mxu0 0.0
        %718 = vmatpush.msra.mxu0 0.0
        %719 = vmatpush.msra.mxu0 0.0
        %v720 = vand.u32 %v576, 4294901760
        %721 = vmatpush.msra.mxu0 %v720
        %v722 = vand.u32 %v579, 4294901760
        %723 = vmatmul.f32.gmra.mxu0 %v722
        %v724 = vpop.f32.mrf.mxu0
        %v725 = vadd.f32 %v703, %v724
        %726 = vdwg.mxu0
        %v727 = vld [vmem:[%s4] sm:$0x1]
        %v729 = vperm.slane %v727, 0
        %v731 = vsub.f32 %v725, %v729
        %v732 = vmul.f32 %v731, %v731
        %v733 = vsub.f32 0.0, %v732
        %v734 = vmul.f32 %v733, 1.442695
        %v735 = vpow.pop %v734
        %736 = vst [vmem:[%s338] sm:$0xff] %v735
        %s737 = sand.u32 %s192, 1
        %s738 = scalar_lea.sflag [#allocation3], %s737
        %s739 = sand.u32 %s192, 1
        %s740 = smul.addr %s739, 8
        %s741 = scalar_lea.vmem [#allocation2], %s740
        %s742 = sand.u32 %s220, 1
        %s743 = scalar_lea.sflag [#allocation5], %s742
        %s744 = sand.u32 %s220, 1
        %s745 = smul.addr %s744, 8
        %s746 = scalar_lea.vmem [#allocation4], %s745
        // Predicated region
        $region45: #{tpu_custom_call.1} parent=43 // pred_check
          %p747 = pneg %p202
        $region46: #{tpu_custom_call.1} parent=43 // pred_check_branch
          %749 = sbr.rel (%p747) target = $region48
        $region47: #{tpu_custom_call.1} parent=43 // pred_region
          %751 = vsyncadd %s738, 0
          %s752 = sadd.s32 %s30, %s29
          %s753 = smul.addr %s752, 8
          %s754 = scalar_lea.hbm %s6, %s753
          %s756 = sshll.u32 %s741, 4
          %s757 = int_to_ptr.vmem [resolvable:$true] %s756
          %s758 = sshll.u32 %s754, 4
          %s759 = int_to_ptr.hbm [resolvable:$true] %s758
          %761 = dma.vmem_to_hbm [thread:$0]  %s757, 128, %s759, %s738
        $region48: #{tpu_custom_call.1} parent=43 // pred_fallthru
          _
        // Predicated region
        $region49: #{tpu_custom_call.1} parent=43 // pred_check
          %p762 = pneg %p230
        $region50: #{tpu_custom_call.1} parent=43 // pred_check_branch
          %764 = sbr.rel (%p762) target = $region52
        $region51: #{tpu_custom_call.1} parent=43 // pred_region
          %766 = vsyncadd %s743, 0
          %s767 = sadd.s32 %s30, %s29
          %s768 = smul.addr %s767, 8
          %s769 = scalar_lea.hbm %s7, %s768
          %s771 = sshll.u32 %s746, 4
          %s772 = int_to_ptr.vmem [resolvable:$true] %s771
          %s773 = sshll.u32 %s769, 4
          %s774 = int_to_ptr.hbm [resolvable:$true] %s773
          %776 = dma.vmem_to_hbm [thread:$0]  %s772, 128, %s774, %s743
        $region52: #{tpu_custom_call.1} parent=43 // pred_fallthru
          _
      $region44: #{tpu_custom_call.1} parent=5 // pred_fallthru
        _
      %p777 = scmp.le.s32.totalorder 2, %s20
      // Predicated region
      $region53: #{tpu_custom_call.1} parent=5 // pred_check
        %p778 = pneg %p777
      $region54: #{tpu_custom_call.1} parent=5 // pred_check_branch
        %780 = sbr.rel (%p778) target = $region56
      $region55: #{tpu_custom_call.1} parent=5 // pred_region
        %s781 = ssub.s32 %s20, 2
        // Predicated region
        $region57: #{tpu_custom_call.1} parent=55 // pred_check
          %p782 = pneg %p208
        $region58: #{tpu_custom_call.1} parent=55 // pred_check_branch
          %784 = sbr.rel (%p782) target = $region60
        $region59: #{tpu_custom_call.1} parent=55 // pred_region
          %s785 = sand.u32 %s193, 1
          %s786 = scalar_lea.sflag [#allocation3], %s785
          %s787 = sand.u32 %s193, 1
          %s788 = smul.addr %s787, 8
          %s789 = scalar_lea.vmem [#allocation2], %s788
          %791 = dma.done %s786, 128
        $region60: #{tpu_custom_call.1} parent=55 // pred_fallthru
          _
        // Predicated region
        $region61: #{tpu_custom_call.1} parent=55 // pred_check
          %p792 = pneg %p236
        $region62: #{tpu_custom_call.1} parent=55 // pred_check_branch
          %794 = sbr.rel (%p792) target = $region64
        $region63: #{tpu_custom_call.1} parent=55 // pred_region
          %s795 = sand.u32 %s221, 1
          %s796 = scalar_lea.sflag [#allocation5], %s795
          %s797 = sand.u32 %s221, 1
          %s798 = smul.addr %s797, 8
          %s799 = scalar_lea.vmem [#allocation4], %s798
          %801 = dma.done %s796, 128
        $region64: #{tpu_custom_call.1} parent=55 // pred_fallthru
          _
      $region56: #{tpu_custom_call.1} parent=5 // pred_fallthru
        _
    $region6: #{tpu_custom_call.1} parent=1 // loop_footer
      %s24 = sadd.s32 1, %s20
    $region7: #{tpu_custom_call.1} parent=1 // loop_footer_branch
      %19 = sbr.rel target = $region3
    $region8: #{tpu_custom_call.1} parent=1 // loop_exit
      _
    %802 = vsyncpa [#allocation3], 1
    %s803 = scalar_lea.sflag [#allocation3], 1
    %804 = vsyncpa %s803, 1
    %805 = vsyncpa [#allocation5], 1
    %s806 = scalar_lea.sflag [#allocation5], 1
    %807 = vsyncpa %s806, 1

</llo_original>
